<compile_context>
chip_gen: v7x
topology: tpu7x:2x2x1
jax: 0.10.0
libtpu: 0.0.40
codegen_flags: <defaults>
</compile_context>

<pallas_src>
import math
import functools

import jax
import jax.numpy as jnp
from jax.experimental import pallas as pl
from jax.experimental.pallas import tpu as pltpu

_LANE = 128
# keep the (up to triple-buffered) weight block under this budget so the tile
# sizing is safe on every generation (v7x has only 64 MiB VMEM per TC).
_WEIGHT_VMEM_BUDGET = 24 * 1024 * 1024


def _round_up(x, m):
    return ((x + m - 1) // m) * m


def _choose_c_tile(num_classes, k, d, max_tile=1024):
    """Lane-dense class tile: multiple of 128, as large as the VMEM budget allows."""
    c_full = _round_up(num_classes, _LANE)
    per_col_bytes = k * d * 2                       # bf16 weight bytes per class column
    cap = (_WEIGHT_VMEM_BUDGET // (3 * per_col_bytes)) // _LANE * _LANE
    cap = max(_LANE, cap)
    return max(_LANE, min(c_full, max_tile, cap))


def prepare_ksub_arcface_weight(weight_iok, c_tile=None):
    """One-time conversion of the PyTorch-layout parameter (in_features, out_features, k)
    into the kernel layout (k, in_features, C_pad) in bf16, PRE-NORMALIZED per
    sub-center column (dim=0 in the PyTorch module, i.e. over in_features) and
    zero-padded on the class axis to a multiple of the class tile.

    Do this once per parameter update, NOT per forward: it removes all weight
    normalization work (and the per-column 1/||w|| scale) from the kernel and
    halves weight HBM bandwidth vs streaming f32."""
    D, C, k = weight_iok.shape
    if c_tile is None:
        c_tile = _choose_c_tile(C, k, D)
    c_pad = _round_up(C, c_tile)
    w = weight_iok.astype(jnp.float32)
    w = w / jnp.maximum(jnp.sqrt(jnp.sum(w * w, axis=0, keepdims=True)), 1e-12)
    w = jnp.transpose(w, (2, 0, 1))                                   # (k, D, C)
    w = jnp.pad(w, ((0, 0), (0, 0), (0, c_pad - C)))                  # padded cols == 0
    return w.astype(jnp.bfloat16), c_tile


def _ksub_arcface_kernel(x_ref, w_ref, lab_ref, o_ref, *,
                         k, c_tile, cos_m, sin_m, th, mm, s, easy_margin):
    # x_ref:   (B_TILE, D)       bf16  normalized input rows
    # w_ref:   (k, D, C_TILE)    bf16  PRE-NORMALIZED sub-center weights
    # lab_ref: (B_TILE, 1)       int32 label, -1 => "no margin" row
    # o_ref:   (B_TILE, C_TILE)  f32 (or bf16)
    x = x_ref[...]                                                    # (B_TILE, D) bf16
    cosine = None
    for i in range(k):                                                # k is small & static
        # bf16 x bf16 MXU matmul with f32 accumulation; weights already unit-norm.
        c = jnp.dot(x, w_ref[i], preferred_element_type=jnp.float32)  # (B_TILE, C_TILE)
        cosine = c if cosine is None else jnp.maximum(cosine, c)      # max over sub-centers

    labels = lab_ref[...]                                             # (B_TILE, 1)
    cols = pl.program_id(0) * c_tile + jax.lax.broadcasted_iota(
        jnp.int32, cosine.shape, 1)                                   # global class index
    mask = cols == labels                                             # at most one True/row

    # Margin math only for the label column (a (B_TILE, 1) vector), not the full tile.
    cos_lab = jnp.sum(jnp.where(mask, cosine, 0.0), axis=-1, keepdims=True)
    sine = jnp.sqrt(jnp.clip(1.0 - cos_lab * cos_lab, 0.0, 1.0))
    phi = cos_lab * cos_m - sine * sin_m
    if easy_margin:
        phi = jnp.where(cos_lab > 0.0, phi, cos_lab)
    else:
        phi = jnp.where(cos_lab > th, phi, cos_lab - mm)

    o_ref[...] = (jnp.where(mask, phi, cosine) * s).astype(o_ref.dtype)


def ksub_arcface(x, w_kdc, num_classes, label=None, *, c_tile=None,
                 s=30.0, m=0.5, easy_margin=False, out_dtype=jnp.float32):
    """x: (B, in_features).  w_kdc: prepared weight from prepare_ksub_arcface_weight,
    shape (k, in_features, C_pad) bf16 (pre-normalized).  label: None, python int,
    or int array (B,).  label=None reproduces the no-margin branch (= cosine * s).
    out_dtype=jnp.bfloat16 halves logits writeback bytes when B is large."""
    assert x.ndim == 2
    B, D = x.shape
    k, Dw, c_pad = w_kdc.shape
    assert Dw == D
    if c_tile is None:
        c_tile = _choose_c_tile(num_classes, k, D)
    assert c_pad % c_tile == 0 and c_tile % _LANE == 0

    # Batch tiling / padding (x & labels are tiny next to the weight stream).
    # Multiple of 16 => fully packed bf16 sublanes; 256 for big batches.
    b_tile = min(256, _round_up(B, 16))
    b_pad = _round_up(B, b_tile)

    # Normalize the input ONCE in the wrapper rather than once per class tile.
    xf = x.astype(jnp.float32)
    x_n = xf / jnp.maximum(jnp.sqrt(jnp.sum(xf * xf, axis=1, keepdims=True)), 1e-12)
    x_n = jnp.pad(x_n, ((0, b_pad - B), (0, 0))).astype(jnp.bfloat16)

    if label is None:
        labels = jnp.full((b_pad, 1), -1, dtype=jnp.int32)   # never matches -> no margin
    else:
        labels = jnp.asarray(label, dtype=jnp.int32)
        if labels.ndim == 0:
            labels = jnp.broadcast_to(labels, (B,))
        labels = labels.reshape(B, 1)
        labels = jnp.pad(labels, ((0, b_pad - B), (0, 0)), constant_values=-1)

    num_c = c_pad // c_tile
    num_b = b_pad // b_tile

    # Weight is streamed HBM->VMEM once per class tile (invariant over the inner
    # batch axis).  In the mem-bound single-batch-tile regime a third buffer hides
    # step-boundary DMA bubbles, provided it fits the VMEM budget.
    w_block_bytes = k * D * c_tile * 2
    triple = (num_b == 1) and (num_c >= 3) and (3 * w_block_bytes <= _WEIGHT_VMEM_BUDGET)
    if triple:
        w_spec = pl.BlockSpec((k, D, c_tile), lambda c, b: (0, 0, c),
                              pipeline_mode=pl.Buffered(3))
    else:
        w_spec = pl.BlockSpec((k, D, c_tile), lambda c, b: (0, 0, c))

    out_bytes = jnp.dtype(out_dtype).itemsize
    vmem_need = ((3 if triple else 2) * w_block_bytes
                 + 2 * b_tile * D * 2
                 + 2 * b_tile * c_tile * out_bytes
                 + 2 * b_tile * 4)
    vmem_limit = min(100 * 1024 * 1024, max(32 * 1024 * 1024, int(vmem_need * 5 // 4)))

    kernel = functools.partial(
        _ksub_arcface_kernel,
        k=k, c_tile=c_tile,
        cos_m=math.cos(m), sin_m=math.sin(m),
        th=math.cos(math.pi - m), mm=math.sin(math.pi - m) * m,
        s=s, easy_margin=easy_margin,
    )

    out = pl.pallas_call(
        kernel,
        out_shape=jax.ShapeDtypeStruct((b_pad, c_pad), out_dtype),
        grid=(num_c, num_b),                           # class tiles OUTER, batch INNER
        in_specs=[
            pl.BlockSpec((b_tile, D), lambda c, b: (b, 0)),
            w_spec,
            pl.BlockSpec((b_tile, 1), lambda c, b: (b, 0)),
        ],
        out_specs=pl.BlockSpec((b_tile, c_tile), lambda c, b: (b, c)),
        compiler_params=pltpu.CompilerParams(
            # No scratch carry across either axis -> both axes fully parallel
            # (megacore-shardable on v7x).
            dimension_semantics=("parallel", "parallel"),
            vmem_limit_bytes=vmem_limit,
        ),
        cost_estimate=pl.CostEstimate(
            flops=2 * b_pad * D * c_pad * k,
            transcendentals=b_pad * num_c,
            bytes_accessed=(w_kdc.size * 2 + x_n.size * 2
                            + labels.size * 4 + b_pad * c_pad * out_bytes),
        ),
    )(x_n, w_kdc, labels)

    return out[:B, :num_classes]


def _reference(x, weight_iok, label, *, s=30.0, m=0.5, easy_margin=False):
    # pure-JAX f32 reference for validation (matches the PyTorch module semantics)
    x = x.astype(jnp.float32)
    w = weight_iok.astype(jnp.float32)
    x_n = x / jnp.maximum(jnp.linalg.norm(x, axis=1, keepdims=True), 1e-12)
    w_n = w / jnp.maximum(jnp.sqrt(jnp.sum(w ** 2, axis=0, keepdims=True)), 1e-12)
    cosine = jnp.einsum('bi,ijk->bjk', x_n, w_n).max(axis=2)
    sine = jnp.sqrt(jnp.clip(1.0 - cosine ** 2, 0.0, 1.0))
    phi = cosine * math.cos(m) - sine * math.sin(m)
    if easy_margin:
        phi = jnp.where(cosine > 0, phi, cosine)
    else:
        phi = jnp.where(cosine > math.cos(math.pi - m), phi,
                        cosine - math.sin(math.pi - m) * m)
    if label is None:
        return cosine * s
    one_hot = jax.nn.one_hot(jnp.asarray(label), cosine.shape[1], dtype=cosine.dtype)
    return (one_hot * phi + (1.0 - one_hot) * cosine) * s


if __name__ == "__main__":
    B, D, C, K = 8, 32, 16, 3   # batch, in_features, out_features, sub-centers

    key = jax.random.PRNGKey(0)
    kx, kw, kl = jax.random.split(key, 3)

    # deterministic xavier_uniform-style init for weight of shape (in_features, out_features, k)
    fan_in = C * K
    fan_out = D * K
    bound = math.sqrt(6.0 / (fan_in + fan_out))
    weight = jax.random.uniform(kw, (D, C, K), jnp.float32, minval=-bound, maxval=bound)

    x = jax.random.normal(kx, (B, D), jnp.float32)
    label = jax.random.randint(kl, (B,), 0, C)

    # one-time layout/dtype prep of the parameter (pre-normalized, kernel layout, bf16)
    w_kdc, c_tile = prepare_ksub_arcface_weight(weight)

    # with-margin path
    out = jax.block_until_ready(ksub_arcface(x, w_kdc, C, label, c_tile=c_tile))
    ref = _reference(x, weight, label)
    assert out.shape == (B, C)
    # bf16 MXU operands (f32 accumulation) -> slightly looser tolerance vs the f32 reference
    assert jnp.allclose(out, ref, atol=1.5e-1, rtol=2e-2), float(jnp.max(jnp.abs(out - ref)))

    # no-label path (output = cosine * s)
    out_nl = jax.block_until_ready(ksub_arcface(x, w_kdc, C, None, c_tile=c_tile))
    ref_nl = _reference(x, weight, None)
    assert jnp.allclose(out_nl, ref_nl, atol=1.5e-1, rtol=2e-2)

    print("KERNEL_OK")
</pallas_src>

<mosaic_0001>
module attributes {stable_mosaic.version = 11 : i64} {
  func.func @_ksub_arcface_kernel(%arg0: i32, %arg1: i32, %arg2: memref<16x32xbf16, #tpu.memory_space<vmem>>, %arg3: memref<3x32x128xbf16, #tpu.memory_space<vmem>>, %arg4: memref<16x1xi32, #tpu.memory_space<vmem>>, %arg5: memref<16x128xf32, #tpu.memory_space<vmem>>) attributes {dimension_semantics = [#tpu.dimension_semantics<parallel>, #tpu.dimension_semantics<parallel>], iteration_bounds = array<i64: 1, 1>, scalar_prefetch = 0 : i64, scratch_operands = 0 : i64, tpu.core_type = #tpu.core_type<tc>, window_params = [{transform_indices = @transform_0, window_bounds = array<i64: 16, 32>}, {transform_indices = @transform_1, window_bounds = array<i64: 3, 32, 128>}, {transform_indices = @transform_2, window_bounds = array<i64: 16, 1>}, {transform_indices = @transform_3, window_bounds = array<i64: 16, 128>}]} {
    %c0 = arith.constant 0 : index
    %c0_0 = arith.constant 0 : index
    %0 = vector.load %arg2[%c0, %c0_0] : memref<16x32xbf16, #tpu.memory_space<vmem>>, vector<16x32xbf16>
    %c0_1 = arith.constant 0 : index
    %c0_2 = arith.constant 0 : index
    %c0_3 = arith.constant 0 : index
    %1 = vector.load %arg3[%c0_1, %c0_2, %c0_3] : memref<3x32x128xbf16, #tpu.memory_space<vmem>>, vector<1x32x128xbf16>
    %2 = vector.shape_cast %1 : vector<1x32x128xbf16> to vector<32x128xbf16>
    %cst = arith.constant dense<0.000000e+00> : vector<16x128xf32>
    %3 = tpu.matmul %0, %2, %cst {dimension_numbers = #tpu.dot_dimension_numbers<[1], [0], [0], [1], [0, 0, 1, 1], [], []>} : vector<16x32xbf16>, vector<32x128xbf16>, vector<16x128xf32> -> vector<16x128xf32>
    %c1 = arith.constant 1 : index
    %c0_4 = arith.constant 0 : index
    %c0_5 = arith.constant 0 : index
    %4 = vector.load %arg3[%c1, %c0_4, %c0_5] : memref<3x32x128xbf16, #tpu.memory_space<vmem>>, vector<1x32x128xbf16>
    %5 = vector.shape_cast %4 : vector<1x32x128xbf16> to vector<32x128xbf16>
    %cst_6 = arith.constant dense<0.000000e+00> : vector<16x128xf32>
    %6 = tpu.matmul %0, %5, %cst_6 {dimension_numbers = #tpu.dot_dimension_numbers<[1], [0], [0], [1], [0, 0, 1, 1], [], []>} : vector<16x32xbf16>, vector<32x128xbf16>, vector<16x128xf32> -> vector<16x128xf32>
    %7 = arith.maximumf %3, %6 : vector<16x128xf32>
    %c2 = arith.constant 2 : index
    %c0_7 = arith.constant 0 : index
    %c0_8 = arith.constant 0 : index
    %8 = vector.load %arg3[%c2, %c0_7, %c0_8] : memref<3x32x128xbf16, #tpu.memory_space<vmem>>, vector<1x32x128xbf16>
    %9 = vector.shape_cast %8 : vector<1x32x128xbf16> to vector<32x128xbf16>
    %cst_9 = arith.constant dense<0.000000e+00> : vector<16x128xf32>
    %10 = tpu.matmul %0, %9, %cst_9 {dimension_numbers = #tpu.dot_dimension_numbers<[1], [0], [0], [1], [0, 0, 1, 1], [], []>} : vector<16x32xbf16>, vector<32x128xbf16>, vector<16x128xf32> -> vector<16x128xf32>
    %11 = arith.maximumf %7, %10 : vector<16x128xf32>
    %c0_10 = arith.constant 0 : index
    %c0_11 = arith.constant 0 : index
    %12 = vector.load %arg4[%c0_10, %c0_11] : memref<16x1xi32, #tpu.memory_space<vmem>>, vector<16x1xi32>
    %c128_i32 = arith.constant 128 : i32
    %13 = arith.muli %arg0, %c128_i32 : i32
    %14 = tpu.iota {dimensions = array<i32: 1>} : vector<16x128xi32>
    %15 = vector.broadcast %13 : i32 to vector<16x128xi32>
    %16 = arith.addi %15, %14 : vector<16x128xi32>
    %17 = vector.broadcast %12 : vector<16x1xi32> to vector<16x128xi32>
    %18 = arith.cmpi eq, %16, %17 : vector<16x128xi32>
    %cst_12 = arith.constant 0.000000e+00 : f32
    %19 = vector.broadcast %cst_12 : f32 to vector<16x128xf32>
    %20 = arith.select %18, %11, %19 : vector<16x128xi1>, vector<16x128xf32>
    %cst_13 = arith.constant dense<0.000000e+00> : vector<16xf32>
    %21 = vector.multi_reduction <add>, %20, %cst_13 [1] : vector<16x128xf32> to vector<16xf32>
    %22 = vector.shape_cast %21 : vector<16xf32> to vector<16x1xf32>
    %23 = arith.mulf %22, %22 : vector<16x1xf32>
    %cst_14 = arith.constant 1.000000e+00 : f32
    %24 = vector.broadcast %cst_14 : f32 to vector<16x1xf32>
    %25 = arith.subf %24, %23 : vector<16x1xf32>
    %cst_15 = arith.constant 0.000000e+00 : f32
    %cst_16 = arith.constant 1.000000e+00 : f32
    %26 = vector.broadcast %cst_15 : f32 to vector<16x1xf32>
    %27 = arith.maximumf %26, %25 : vector<16x1xf32>
    %28 = vector.broadcast %cst_16 : f32 to vector<16x1xf32>
    %29 = arith.minimumf %28, %27 : vector<16x1xf32>
    %30 = math.sqrt %29 : vector<16x1xf32>
    %cst_17 = arith.constant 0.87758255 : f32
    %31 = vector.broadcast %cst_17 : f32 to vector<16x1xf32>
    %32 = arith.mulf %22, %31 : vector<16x1xf32>
    %cst_18 = arith.constant 0.47942555 : f32
    %33 = vector.broadcast %cst_18 : f32 to vector<16x1xf32>
    %34 = arith.mulf %30, %33 : vector<16x1xf32>
    %35 = arith.subf %32, %34 : vector<16x1xf32>
    %cst_19 = arith.constant -0.87758255 : f32
    %36 = vector.broadcast %cst_19 : f32 to vector<16x1xf32>
    %37 = arith.cmpf ogt, %22, %36 : vector<16x1xf32>
    %cst_20 = arith.constant 0.239712775 : f32
    %38 = vector.broadcast %cst_20 : f32 to vector<16x1xf32>
    %39 = arith.subf %22, %38 : vector<16x1xf32>
    %40 = arith.select %37, %35, %39 : vector<16x1xi1>, vector<16x1xf32>
    %41 = vector.shape_cast %40 : vector<16x1xf32> to vector<16x1xf32>
    %42 = vector.broadcast %41 : vector<16x1xf32> to vector<16x128xf32>
    %43 = arith.select %18, %42, %11 : vector<16x128xi1>, vector<16x128xf32>
    %cst_21 = arith.constant 3.000000e+01 : f32
    %44 = vector.broadcast %cst_21 : f32 to vector<16x128xf32>
    %45 = arith.mulf %43, %44 : vector<16x128xf32>
    %c0_22 = arith.constant 0 : index
    %c0_23 = arith.constant 0 : index
    %46 = vector.load %arg5[%c0_22, %c0_23] : memref<16x128xf32, #tpu.memory_space<vmem>>, vector<16x128xf32>
    tpu.vector_store %arg5[%c0_22, %c0_23], %45 {strides = array<i32>} : memref<16x128xf32, #tpu.memory_space<vmem>>, vector<16x128xf32>,
    return
  }
  func.func @transform_0(%arg0: i32, %arg1: i32) -> (i32, i32) {
    %c0_i32 = arith.constant 0 : i32
    %c0_i32_0 = arith.constant 0 : i32
    return %arg1, %c0_i32 : i32, i32
  }
  func.func @transform_1(%arg0: i32, %arg1: i32) -> (i32, i32, i32) {
    %c0_i32 = arith.constant 0 : i32
    %c0_i32_0 = arith.constant 0 : i32
    %c0_i32_1 = arith.constant 0 : i32
    return %c0_i32, %c0_i32_0, %arg0 : i32, i32, i32
  }
  func.func @transform_2(%arg0: i32, %arg1: i32) -> (i32, i32) {
    %c0_i32 = arith.constant 0 : i32
    %c0_i32_0 = arith.constant 0 : i32
    return %arg1, %c0_i32 : i32, i32
  }
  func.func @transform_3(%arg0: i32, %arg1: i32) -> (i32, i32) {
    %c0_i32 = arith.constant 0 : i32
    return %arg1, %arg0 : i32, i32
  }
}

</mosaic_0001>

<llo_original>
// kernel: tpu_custom_call.1
$region0: #{tpu_custom_call.1}
  #allocation0 [shape = 'u32[]', space=smem, size = 0x4, offset = 0x4, fixed_abs, tag = 'smem constant byte address 0x4 - core index']
  #allocation1 [shape = 'u32[144,128]{1,0:T(1,128)}', space=vmem, size = 0x12000, scoped, tag = 'internal scratch']
  %s0 = inlined_call_operand.vmem [shape: bf16[16,32], index: 0, kind: input, shape index: {}]
  %s1 = inlined_call_operand.hbm [shape: bf16[3,32,128], index: 1, kind: input, shape index: {}]
  %s2 = inlined_call_operand.vmem [shape: s32[16,1], index: 2, kind: input, shape index: {}]
  %s3 = inlined_call_operand.hbm [shape: f32[16,128], index: 3, kind: output, shape index: {}]
  %s4 = sld [smem:[#allocation0]]
  $region26: #{tpu_custom_call.1} parent=0
    _
  %s6 = ssub.s32 1, %s4
  %s7 = scalar_select 0, %s6, %s4
  $region1: #{tpu_custom_call.1} parent=0
    #allocation2 [shape = 'u8[24576]{0}', space=vmem, size = 0x6000, scoped, tag = 'input window, operand 1, single buffered']
    #allocation3 [shape = 's32[1]{0}', space=sflag, size = 0x4, scoped, tag = 'scoped memory for tpu_custom_call.1']
    #allocation4 [shape = 's32[1]{0}', space=sflag, size = 0x4, scoped, tag = 'scoped memory for tpu_custom_call.1']
    #allocation5 [shape = 'u8[8192]{0}', space=vmem, size = 0x2000, scoped, tag = 'output window, operand 0, single buffered']
    %8 = vsyncpa [#allocation3], 0
    %9 = vsyncpa [#allocation4], 0
    // Predicated region
    $region2: #{tpu_custom_call.1} parent=1 // pred_check
      _
    $region3: #{tpu_custom_call.1} parent=1 // pred_check_branch
      %11 = sbr.rel (0) target = $region5
    $region4: #{tpu_custom_call.1} parent=1 // pred_region
      _
    $region5: #{tpu_custom_call.1} parent=1 // pred_fallthru
      _
    // Predicated region
    $region6: #{tpu_custom_call.1} parent=1 // pred_check
      _
    $region7: #{tpu_custom_call.1} parent=1 // pred_check_branch
      %13 = sbr.rel (0) target = $region9
    $region8: #{tpu_custom_call.1} parent=1 // pred_region
      %s15 = ssub.s32 768, 768
      %16 = vsyncadd [#allocation3], %s15
      %s17 = sshll.u32 [#allocation2], 4
      %s18 = int_to_ptr.vmem [resolvable:$true] %s17
      %23 = dma.hbm_to_vmem [thread:$0]  %s1, 768, %s18, [#allocation3], 64, 64, 4
    $region9: #{tpu_custom_call.1} parent=1 // pred_fallthru
      _
    // Predicated region
    $region10: #{tpu_custom_call.1} parent=1 // pred_check
      _
    $region11: #{tpu_custom_call.1} parent=1 // pred_check_branch
      %25 = sbr.rel (0) target = $region13
    $region12: #{tpu_custom_call.1} parent=1 // pred_region
      _
    $region13: #{tpu_custom_call.1} parent=1 // pred_fallthru
      _
    // Predicated region
    $region14: #{tpu_custom_call.1} parent=1 // pred_check
      _
    $region15: #{tpu_custom_call.1} parent=1 // pred_check_branch
      %27 = sbr.rel (0) target = $region17
    $region16: #{tpu_custom_call.1} parent=1 // pred_region
      %28 = dma.done [#allocation3], 768
    $region17: #{tpu_custom_call.1} parent=1 // pred_fallthru
      _
    %v30 = vld [vmem:[%s0] sm:$0xf]
    %v31 = vld [vmem:[%s0 + $0x4] sm:$0xf]
    %v32 = vld [vmem:[#allocation2] sm:$0xf]
    %v33 = vld [vmem:[#allocation2 + $0x4] sm:$0xf]
    %v34 = vld [vmem:[#allocation2 + $0x8] sm:$0xf]
    %v35 = vld [vmem:[#allocation2 + $0xc] sm:$0xf]
    %v38 = vunpack.c.l.b16 %v30
    %v39 = vunpack.c.l.b16 %v31
    %v40 = vpack.c.b16 %v39, %v38
    %v45 = vunpack.c.l.b16 %v32
    %v46 = vunpack.c.l.b16 %v33
    %v47 = vunpack.c.l.b16 %v34
    %v48 = vunpack.c.l.b16 %v35
    %v49 = vpack.c.b16 %v46, %v45
    %v50 = vpack.c.b16 %v48, %v47
    %vm53 = vcmask 261120
    %v55 = vsel %vm53, %v40, 0
    %57 = vmatprep.subr.bf16.mxu0 0
    %58 = vmatpush1.bf16.msra.mxu0 %v49
    %59 = vmatprep.subr.bf16.mxu0 0
    %60 = vmatpush1.bf16.msra.mxu0 %v50
    %61 = vmatprep.subr.bf16.mxu0 0
    %62 = vmatpush1.bf16.msra.mxu0 0
    %63 = vmatprep.subr.bf16.mxu0 0
    %64 = vmatpush1.bf16.msra.mxu0 0
    %65 = vmatprep.subr.bf16.mxu0 0
    %66 = vmatpush1.bf16.msra.mxu0 0
    %67 = vmatprep.subr.bf16.mxu0 0
    %68 = vmatpush1.bf16.msra.mxu0 0
    %69 = vmatprep.subr.bf16.mxu0 0
    %70 = vmatpush1.bf16.msra.mxu0 0
    %71 = vmatprep.subr.bf16.mxu0 0
    %72 = vmatpush1.bf16.msra.mxu0 0
    %73 = vmatprep.subr.bf16.mxu0 0
    %74 = vmatpush1.bf16.msra.mxu0 0
    %75 = vmatprep.subr.bf16.mxu0 0
    %76 = vmatpush1.bf16.msra.mxu0 0
    %77 = vmatprep.subr.bf16.mxu0 0
    %78 = vmatpush1.bf16.msra.mxu0 0
    %79 = vmatprep.subr.bf16.mxu0 0
    %80 = vmatpush1.bf16.msra.mxu0 0
    %81 = vmatprep.subr.bf16.mxu0 0
    %82 = vmatpush1.bf16.msra.mxu0 0
    %83 = vmatprep.subr.bf16.mxu0 0
    %84 = vmatpush1.bf16.msra.mxu0 0
    %85 = vmatprep.subr.bf16.mxu0 0
    %86 = vmatpush1.bf16.msra.mxu0 0
    %87 = vmatprep.subr.bf16.mxu0 0
    %88 = vmatpush1.bf16.msra.mxu0 0
    %89 = vmatprep.mubr.bf16.mxu0 0
    %90 = vmatmul.mubr.bf16.gmra.mrb[0].mxu0 %v55
    %v91 = vpop.f32.mrb[0].mxu0
    %v92 = vadd.f32 0.0, %v91
    %v93 = vpop.f32.mrb[0].mxu0
    %v94 = vpop.f32.mrb[0].mxu0
    %v95 = vadd.f32 0.0, %v94
    %v96 = vpop.f32.mrb[0].mxu0
    %97 = vdwg.mxu0
    %s98 = scalar_lea.vmem [#allocation2], 16
    %v99 = vld [vmem:[%s98] sm:$0xf]
    %v100 = vld [vmem:[%s98 + $0x4] sm:$0xf]
    %v101 = vld [vmem:[%s98 + $0x8] sm:$0xf]
    %v102 = vld [vmem:[%s98 + $0xc] sm:$0xf]
    %v107 = vunpack.c.l.b16 %v99
    %v108 = vunpack.c.l.b16 %v100
    %v109 = vunpack.c.l.b16 %v101
    %v110 = vunpack.c.l.b16 %v102
    %v111 = vpack.c.b16 %v108, %v107
    %v112 = vpack.c.b16 %v110, %v109
    %115 = vmatprep.subr.bf16.mxu0 0
    %116 = vmatpush1.bf16.msra.mxu0 %v111
    %117 = vmatprep.subr.bf16.mxu0 0
    %118 = vmatpush1.bf16.msra.mxu0 %v112
    %119 = vmatprep.subr.bf16.mxu0 0
    %120 = vmatpush1.bf16.msra.mxu0 0
    %121 = vmatprep.subr.bf16.mxu0 0
    %122 = vmatpush1.bf16.msra.mxu0 0
    %123 = vmatprep.subr.bf16.mxu0 0
    %124 = vmatpush1.bf16.msra.mxu0 0
    %125 = vmatprep.subr.bf16.mxu0 0
    %126 = vmatpush1.bf16.msra.mxu0 0
    %127 = vmatprep.subr.bf16.mxu0 0
    %128 = vmatpush1.bf16.msra.mxu0 0
    %129 = vmatprep.subr.bf16.mxu0 0
    %130 = vmatpush1.bf16.msra.mxu0 0
    %131 = vmatprep.subr.bf16.mxu0 0
    %132 = vmatpush1.bf16.msra.mxu0 0
    %133 = vmatprep.subr.bf16.mxu0 0
    %134 = vmatpush1.bf16.msra.mxu0 0
    %135 = vmatprep.subr.bf16.mxu0 0
    %136 = vmatpush1.bf16.msra.mxu0 0
    %137 = vmatprep.subr.bf16.mxu0 0
    %138 = vmatpush1.bf16.msra.mxu0 0
    %139 = vmatprep.subr.bf16.mxu0 0
    %140 = vmatpush1.bf16.msra.mxu0 0
    %141 = vmatprep.subr.bf16.mxu0 0
    %142 = vmatpush1.bf16.msra.mxu0 0
    %143 = vmatprep.subr.bf16.mxu0 0
    %144 = vmatpush1.bf16.msra.mxu0 0
    %145 = vmatprep.subr.bf16.mxu0 0
    %146 = vmatpush1.bf16.msra.mxu0 0
    %147 = vmatprep.mubr.bf16.mxu0 0
    %148 = vmatmul.mubr.bf16.gmra.mrb[0].mxu0 %v55
    %v149 = vpop.f32.mrb[0].mxu0
    %v150 = vadd.f32 0.0, %v149
    %v151 = vpop.f32.mrb[0].mxu0
    %v152 = vpop.f32.mrb[0].mxu0
    %v153 = vadd.f32 0.0, %v152
    %v154 = vpop.f32.mrb[0].mxu0
    %155 = vdwg.mxu0
    %v156 = vmax.f32 %v92, %v150
    %v157 = vmax.f32 %v95, %v153
    %s158 = scalar_lea.vmem [#allocation2], 32
    %v159 = vld [vmem:[%s158] sm:$0xf]
    %v160 = vld [vmem:[%s158 + $0x4] sm:$0xf]
    %v161 = vld [vmem:[%s158 + $0x8] sm:$0xf]
    %v162 = vld [vmem:[%s158 + $0xc] sm:$0xf]
    %v167 = vunpack.c.l.b16 %v159
    %v168 = vunpack.c.l.b16 %v160
    %v169 = vunpack.c.l.b16 %v161
    %v170 = vunpack.c.l.b16 %v162
    %v171 = vpack.c.b16 %v168, %v167
    %v172 = vpack.c.b16 %v170, %v169
    %175 = vmatprep.subr.bf16.mxu0 0
    %176 = vmatpush1.bf16.msra.mxu0 %v171
    %177 = vmatprep.subr.bf16.mxu0 0
    %178 = vmatpush1.bf16.msra.mxu0 %v172
    %179 = vmatprep.subr.bf16.mxu0 0
    %180 = vmatpush1.bf16.msra.mxu0 0
    %181 = vmatprep.subr.bf16.mxu0 0
    %182 = vmatpush1.bf16.msra.mxu0 0
    %183 = vmatprep.subr.bf16.mxu0 0
    %184 = vmatpush1.bf16.msra.mxu0 0
    %185 = vmatprep.subr.bf16.mxu0 0
    %186 = vmatpush1.bf16.msra.mxu0 0
    %187 = vmatprep.subr.bf16.mxu0 0
    %188 = vmatpush1.bf16.msra.mxu0 0
    %189 = vmatprep.subr.bf16.mxu0 0
    %190 = vmatpush1.bf16.msra.mxu0 0
    %191 = vmatprep.subr.bf16.mxu0 0
    %192 = vmatpush1.bf16.msra.mxu0 0
    %193 = vmatprep.subr.bf16.mxu0 0
    %194 = vmatpush1.bf16.msra.mxu0 0
    %195 = vmatprep.subr.bf16.mxu0 0
    %196 = vmatpush1.bf16.msra.mxu0 0
    %197 = vmatprep.subr.bf16.mxu0 0
    %198 = vmatpush1.bf16.msra.mxu0 0
    %199 = vmatprep.subr.bf16.mxu0 0
    %200 = vmatpush1.bf16.msra.mxu0 0
    %201 = vmatprep.subr.bf16.mxu0 0
    %202 = vmatpush1.bf16.msra.mxu0 0
    %203 = vmatprep.subr.bf16.mxu0 0
    %204 = vmatpush1.bf16.msra.mxu0 0
    %205 = vmatprep.subr.bf16.mxu0 0
    %206 = vmatpush1.bf16.msra.mxu0 0
    %207 = vmatprep.mubr.bf16.mxu0 0
    %208 = vmatmul.mubr.bf16.gmra.mrb[0].mxu0 %v55
    %v209 = vpop.f32.mrb[0].mxu0
    %v210 = vadd.f32 0.0, %v209
    %v211 = vpop.f32.mrb[0].mxu0
    %v212 = vpop.f32.mrb[0].mxu0
    %v213 = vadd.f32 0.0, %v212
    %v214 = vpop.f32.mrb[0].mxu0
    %215 = vdwg.mxu0
    %v216 = vmax.f32 %v156, %v210
    %v217 = vmax.f32 %v157, %v213
    %v218 = vld [vmem:[%s2] sm:$0xff]
    %v219 = vld [vmem:[%s2 + $0x8] sm:$0xff]
    %s220 = smul.u32 0, 128
    %v221 = vlaneseq
    %v222 = vand.u32 %v221, 127
    %v223 = vstv %s220
    %v224 = vadd.s32 %v223, %v222
    %225 = vset.pattern.permute.xlu0 0
    %226 = vperm.xlu0 %225, %v218
    %v227 = vpop.permute.xlu0 %226
    %228 = vset.pattern.permute.xlu0 0
    %229 = vperm.xlu0 %228, %v219
    %v230 = vpop.permute.xlu0 %229
    %vm231 = vcmp.eq.s32.totalorder %v224, %v227
    %vm232 = vcmp.eq.s32.totalorder %v224, %v230
    %v233 = vsel %vm231, %v216, 0.0
    %v234 = vsel %vm232, %v217, 0.0
    %235 = vadd.xlane.f32.xlu0 %v233
    %v236 = vpop.xlane.xlu0 %235
    %237 = vadd.xlane.f32.xlu0 %v234
    %v238 = vpop.xlane.xlu0 %237
    %v239 = vmul.f32 %v236, %v236
    %v240 = vmul.f32 %v238, %v238
    %v241 = vsub.f32 1.0, %v239
    %v242 = vsub.f32 1.0, %v240
    %v243 = vmax.f32 %v241, 0.0
    %v244 = vmax.f32 %v242, 0.0
    %v245 = vmin.f32 %v243, 1.0
    %v246 = vmin.f32 %v244, 1.0
    %v247 = vrsqrt.pop %v245
    %v248 = vmul.f32 %v245, %v247
    %vm249 = vcmp.eq.f32.partialorder %v245, inf
    %v250 = vsel %vm249, %v245, %v248
    %vm251 = vcmp.eq.f32.partialorder %v245, 0.0
    %v252 = vand.u32 %v245, 2147483648
    %v253 = vsel %vm251, %v252, %v250
    %v254 = vrsqrt.pop %v246
    %v255 = vmul.f32 %v246, %v254
    %vm256 = vcmp.eq.f32.partialorder %v246, inf
    %v257 = vsel %vm256, %v246, %v255
    %vm258 = vcmp.eq.f32.partialorder %v246, 0.0
    %v259 = vand.u32 %v246, 2147483648
    %v260 = vsel %vm258, %v259, %v257
    %v261 = vmul.f32 %v236, 0.87758255
    %v262 = vmul.f32 %v238, 0.87758255
    %v263 = vmul.f32 %v253, 0.47942555
    %v264 = vmul.f32 %v260, 0.47942555
    %v265 = vsub.f32 %v261, %v263
    %v266 = vsub.f32 %v262, %v264
    %vm267 = vcmp.gt.f32.partialorder %v236, -0.87758255
    %vm268 = vcmp.gt.f32.partialorder %v238, -0.87758255
    %v269 = vsub.f32 %v236, 0.23971277
    %v270 = vsub.f32 %v238, 0.23971277
    %v271 = vsel %vm267, %v265, %v269
    %v272 = vsel %vm268, %v266, %v270
    %v273 = vsel %vm231, %v271, %v216
    %v274 = vsel %vm232, %v272, %v217
    %v275 = vmul.f32 %v273, 30.0
    %v276 = vmul.f32 %v274, 30.0
    %277 = vst [vmem:[#allocation5] sm:$0xff] %v275
    %278 = vst [vmem:[#allocation5 + $0x8] sm:$0xff] %v276
    // Predicated region
    $region18: #{tpu_custom_call.1} parent=1 // pred_check
      _
    $region19: #{tpu_custom_call.1} parent=1 // pred_check_branch
      %280 = sbr.rel (0) target = $region21
    $region20: #{tpu_custom_call.1} parent=1 // pred_region
      %s282 = ssub.s32 256, 256
      %283 = vsyncadd [#allocation4], %s282
      %s284 = sshll.u32 [#allocation5], 4
      %s285 = int_to_ptr.vmem [resolvable:$true] %s284
      %290 = dma.vmem_to_hbm [thread:$0]  %s285, 256, %s3, [#allocation4], 128, 128, 8
    $region21: #{tpu_custom_call.1} parent=1 // pred_fallthru
      _
    // Predicated region
    $region22: #{tpu_custom_call.1} parent=1 // pred_check
      _
    $region23: #{tpu_custom_call.1} parent=1 // pred_check_branch
      %292 = sbr.rel (0) target = $region25
    $region24: #{tpu_custom_call.1} parent=1 // pred_region
      %293 = dma.done [#allocation4], 256
    $region25: #{tpu_custom_call.1} parent=1 // pred_fallthru
      _
    %294 = vsyncpa [#allocation3], 1
    %295 = vsyncpa [#allocation4], 1

</llo_original>
